<compile_context>
chip_gen: v7x
topology: tpu7x:2x2x1
jax: 0.10.0
libtpu: 0.0.40
codegen_flags: <defaults>
</compile_context>

<pallas_src>
import functools

import jax
import jax.numpy as jnp
from jax.experimental import pallas as pl
from jax.experimental.pallas import tpu as pltpu

_LANE = 128


def _round_up(x, m):
    return ((x + m - 1) // m) * m


def _sublane(dtype):
    # sublane tile is 8 for 32-bit, 16 for 16-bit activations
    return 16 if jnp.dtype(dtype).itemsize == 2 else 8


def _choose_tm(batch, sub):
    """Pick a batch-tile size that (a) minimizes batch padding, (b) gives >=2
    grid steps when possible (so v7x's two TensorCores both get work), and
    (c) otherwise prefers fewer, larger steps."""
    candidates = set()
    for n_steps in (1, 2, 3, 4, 6, 8):
        tm = _round_up(-(-batch // n_steps), sub)
        if 0 < tm <= 512:
            candidates.add(tm)
    for tm in (512, 256, 128):
        candidates.add(tm)

    def score(tm):
        b_pad = _round_up(batch, tm)
        grid = b_pad // tm
        waste = b_pad - batch
        # prefer: >=2 grid steps (megacore) -> minimal padding -> fewer steps -> larger tile
        return (0 if grid >= 2 else 1, waste, grid, -tm)

    return min(candidates, key=score)


def _encoder_kernel(*refs, n_layers, act, mxu_dtype):
    """Fused MLP encoder tile.

    refs = [x, (w_0, b_0), ..., (w_{L-1}, b_{L-1}), out]
    x / out are (TM, D) batch tiles; weights/biases are full-array resident.
    The last (w, b) pair is the fused [mu | log_sigma] head (no activation).
    """
    x_ref = refs[0]
    out_ref = refs[-1]

    # Activations stay f32 for VPU/EUP work (v5e has no bf16 VPU/EUP path);
    # cast to the MXU dtype only at the dot inputs.
    h = x_ref[...].astype(jnp.float32)
    for li in range(n_layers):
        w_ref = refs[1 + 2 * li]
        b_ref = refs[2 + 2 * li]
        h = (
            jnp.dot(
                h.astype(mxu_dtype),
                w_ref[...].astype(mxu_dtype),
                preferred_element_type=jnp.float32,
            )
            + b_ref[...].astype(jnp.float32)
        )
        if li < n_layers - 1:  # hidden layers only; fused head stays linear
            if act == "relu":
                h = jnp.maximum(h, 0.0)
            elif act == "lrelu":
                h = jnp.where(h >= 0.0, h, 0.1 * h)
            elif act == "tanh":
                h = jnp.tanh(h)
            elif act == "sigmoid":
                h = jax.nn.sigmoid(h)
            # act == 'linear' -> identity
            # TODO(synk): nn.Dropout is stochastic; dropout_prob=0.0 -> identity.
            # TODO(synk): bn_enc=True (BatchNorm1d) branch not implemented.

    out_ref[...] = h.astype(out_ref.dtype)


def prepare_encoder_params(params, *, param_dtype=jnp.float32):
    """One-time parameter prep (hoisted out of the per-call path).

    * Fuses the mu / log_sigma heads into a single lane-dense matmul, each head
      padded to its own 128-lane tile (fused output width = 2 * round_up(latent, 128)).
    * Zero-pads every weight's OUTPUT dim (and subsequent input dims) to
      128-lane multiples.  The FIRST layer's input dim stays unpadded so x
      needs no feature padding in HBM.
    * Optionally stores weights in bf16 (param_dtype=jnp.bfloat16) to halve
      weight DMA/VMEM when using the bf16 MXU path.

    Returns (layers, latent_dim) where layers = [(W, b), ...] lane-padded.
    """
    n_hidden = len(params) - 2
    latent_dim = int(params[-1][0].shape[1])
    head_stride = _round_up(latent_dim, _LANE)

    w_mu, b_mu = params[-2]
    w_ls, b_ls = params[-1]
    d_hidden = w_mu.shape[0]

    w_head = jnp.zeros((d_hidden, 2 * head_stride), jnp.float32)
    w_head = w_head.at[:, :latent_dim].set(w_mu.astype(jnp.float32))
    w_head = w_head.at[:, head_stride:head_stride + latent_dim].set(w_ls.astype(jnp.float32))
    b_head = jnp.zeros((1, 2 * head_stride), jnp.float32)
    b_head = b_head.at[:, :latent_dim].set(b_mu.astype(jnp.float32))
    b_head = b_head.at[:, head_stride:head_stride + latent_dim].set(b_ls.astype(jnp.float32))

    raw_layers = list(params[:n_hidden]) + [(w_head, b_head)]
    layers = []
    in_pad = int(params[0][0].shape[0])  # true d_in: x stays unpadded in HBM
    for w, b in raw_layers:
        di, do = w.shape
        dop = _round_up(do, _LANE)
        wp = jnp.zeros((in_pad, dop), param_dtype).at[:di, :do].set(w.astype(param_dtype))
        bp = jnp.zeros((1, dop), param_dtype).at[:, :do].set(b.astype(param_dtype))
        layers.append((wp, bp))
        in_pad = dop
    return layers, latent_dim


@functools.partial(jax.jit, static_argnames=("latent_dim", "act", "use_bf16_matmul"))
def encoder_forward(x, layers, *, latent_dim, act="relu", use_bf16_matmul=False):
    """x: (batch, d_in); layers: output of prepare_encoder_params."""
    batch, d_in = x.shape
    n_layers = len(layers)
    head_p = int(layers[-1][0].shape[1])          # 2 * head_stride
    head_stride = head_p // 2

    sub = _sublane(x.dtype)
    tm = _choose_tm(batch, sub)

    param_bytes = sum(
        w.size * jnp.dtype(w.dtype).itemsize + b.size * jnp.dtype(b.dtype).itemsize
        for w, b in layers
    )
    act_itemsize = jnp.dtype(x.dtype).itemsize

    # ---- VMEM budget (v7x has only 64 MiB / TensorCore): shrink tile if needed ----
    def vmem_est(t):
        # x + out tiles double-buffered; weights/biases single-buffered (Buffered(1)).
        return 2 * t * (d_in + head_p) * act_itemsize + param_bytes + (2 << 20)

    while vmem_est(tm) > (40 << 20) and tm > sub:
        tm = max(sub, _round_up(tm // 2, sub))
    # TODO(synk): if param_bytes alone ever exceeds the VMEM budget, weights must be
    # streamed per layer (memory_space=pl.ANY + pltpu.emit_pipeline); not needed here.

    b_pad = _round_up(batch, tm)
    grid = (b_pad // tm,)

    xp = x if b_pad == batch else jnp.zeros((b_pad, d_in), x.dtype).at[:batch].set(x)

    flat_inputs = [xp]
    # x block uses the full-extent feature dim -> no HBM feature padding needed.
    in_specs = [pl.BlockSpec((tm, d_in), lambda i: (i, 0))]
    for wp, bp in layers:
        flat_inputs += [wp, bp]
        # Constant block index -> DMA'd once and resident; single buffer suffices.
        in_specs += [
            pl.BlockSpec(wp.shape, lambda i: (0, 0), pipeline_mode=pl.Buffered(1)),
            pl.BlockSpec(bp.shape, lambda i: (0, 0), pipeline_mode=pl.Buffered(1)),
        ]

    out_shape = jax.ShapeDtypeStruct((b_pad, head_p), x.dtype)
    out_specs = pl.BlockSpec((tm, head_p), lambda i: (i, 0))

    # ---- cost estimate ------------------------------------------------------
    flops = 2 * b_pad * sum(int(w.shape[0]) * int(w.shape[1]) for w, _ in layers)
    transcendentals = (
        b_pad * sum(int(w.shape[1]) for w, _ in layers[:-1])
        if act in ("tanh", "sigmoid")
        else 0
    )
    bytes_accessed = (
        param_bytes
        + b_pad * d_in * act_itemsize
        + b_pad * head_p * act_itemsize
    )
    cost = pl.CostEstimate(
        flops=int(flops), transcendentals=int(transcendentals),
        bytes_accessed=int(bytes_accessed),
    )

    vmem_limit = int(min(max(vmem_est(tm), 4 << 20), 48 << 20))

    mxu_dtype = jnp.bfloat16 if use_bf16_matmul else jnp.float32
    kernel = functools.partial(
        _encoder_kernel, n_layers=n_layers, act=act, mxu_dtype=mxu_dtype
    )
    out = pl.pallas_call(
        kernel,
        out_shape=out_shape,
        grid=grid,
        in_specs=in_specs,
        out_specs=out_specs,
        compiler_params=pltpu.CompilerParams(
            dimension_semantics=("parallel",),
            vmem_limit_bytes=vmem_limit,
        ),
        cost_estimate=cost,
    )(*flat_inputs)

    # log_sigma starts at a 128-lane tile boundary (head_stride).
    mu = out[:batch, :latent_dim]
    log_sigma = out[:batch, head_stride:head_stride + latent_dim]
    return mu, log_sigma


def init_encoder_params(key, dims, latent_dim):
    """weights_init_uniform_rule: W ~ U(-1/sqrt(fan_in), 1/sqrt(fan_in)), b = 0."""
    layer_dims = [(dims[i], dims[i + 1]) for i in range(len(dims) - 1)]
    layer_dims += [(dims[-1], latent_dim), (dims[-1], latent_dim)]  # mu, log_sigma heads
    params = []
    for fan_in, fan_out in layer_dims:
        key, sub = jax.random.split(key)
        bound = 1.0 / float(fan_in) ** 0.5
        w = jax.random.uniform(
            sub, (fan_in, fan_out), dtype=jnp.float32, minval=-bound, maxval=bound
        )
        b = jnp.zeros((1, fan_out), dtype=jnp.float32)
        params.append((w, b))
    return params


def encoder_reference(x, params, act="relu"):
    """Pure-JAX reference of the same forward, for correctness checks."""
    h = x.astype(jnp.float32)
    for w, b in params[:-2]:
        h = h @ w + b
        if act == "relu":
            h = jnp.maximum(h, 0.0)
    mu = h @ params[-2][0] + params[-2][1]
    log_sigma = h @ params[-1][0] + params[-1][1]
    return mu, log_sigma


if __name__ == "__main__":
    # Small, forward-consistent shapes: Encoder(dims=[32, 64, 48], latent_dim=16)
    dims = [32, 64, 48]
    latent_dim = 16

    key = jax.random.PRNGKey(0)
    key, pkey = jax.random.split(key)
    params = init_encoder_params(pkey, dims, latent_dim)

    # One-time parameter prep (fused head + lane padding), hoisted out of the call path.
    layers, latent_dim = prepare_encoder_params(params)

    # f32 MXU path: exact PyTorch-parity numerics.  Second batch size exercises
    # the multi-step grid (>= 2 steps -> both v7x TensorCores) and batch padding.
    for batch in (8, 260):
        key, xkey = jax.random.split(key)
        x = jax.random.normal(xkey, (batch, dims[0]), dtype=jnp.float32)
        mu, log_sigma = encoder_forward(x, layers, latent_dim=latent_dim, act="relu")
        jax.block_until_ready((mu, log_sigma))

        mu_ref, ls_ref = encoder_reference(x, params, act="relu")
        assert mu.shape == (batch, latent_dim) and log_sigma.shape == (batch, latent_dim)
        assert jnp.allclose(mu, mu_ref, rtol=1e-4, atol=1e-4)
        assert jnp.allclose(log_sigma, ls_ref, rtol=1e-4, atol=1e-4)

    # bf16-operand MXU path (f32 accumulation): full MXU rate, looser numerics.
    key, xkey = jax.random.split(key)
    x = jax.random.normal(xkey, (8, dims[0]), dtype=jnp.float32)
    mu_bf, ls_bf = encoder_forward(
        x, layers, latent_dim=latent_dim, act="relu", use_bf16_matmul=True
    )
    jax.block_until_ready((mu_bf, ls_bf))
    mu_ref, ls_ref = encoder_reference(x, params, act="relu")
    assert jnp.allclose(mu_bf, mu_ref, rtol=5e-2, atol=5e-2)
    assert jnp.allclose(ls_bf, ls_ref, rtol=5e-2, atol=5e-2)

    print("KERNEL_OK")
</pallas_src>

<mosaic_0001>
module attributes {stable_mosaic.version = 11 : i64} {
  func.func @_encoder_kernel(%arg0: i32, %arg1: memref<8x32xf32, #tpu.memory_space<vmem>>, %arg2: memref<32x128xf32, #tpu.memory_space<vmem>>, %arg3: memref<1x128xf32, #tpu.memory_space<vmem>>, %arg4: memref<128x128xf32, #tpu.memory_space<vmem>>, %arg5: memref<1x128xf32, #tpu.memory_space<vmem>>, %arg6: memref<128x256xf32, #tpu.memory_space<vmem>>, %arg7: memref<1x256xf32, #tpu.memory_space<vmem>>, %arg8: memref<8x256xf32, #tpu.memory_space<vmem>>) attributes {dimension_semantics = [#tpu.dimension_semantics<parallel>], iteration_bounds = array<i64: 1>, scalar_prefetch = 0 : i64, scratch_operands = 0 : i64, tpu.core_type = #tpu.core_type<tc>, window_params = [{transform_indices = @transform_0, window_bounds = array<i64: 8, 32>}, {pipeline_mode = #tpu.pipeline_mode<synchronous>, transform_indices = @transform_1, window_bounds = array<i64: 32, 128>}, {pipeline_mode = #tpu.pipeline_mode<synchronous>, transform_indices = @transform_2, window_bounds = array<i64: 1, 128>}, {pipeline_mode = #tpu.pipeline_mode<synchronous>, transform_indices = @transform_3, window_bounds = array<i64: 128, 128>}, {pipeline_mode = #tpu.pipeline_mode<synchronous>, transform_indices = @transform_4, window_bounds = array<i64: 1, 128>}, {pipeline_mode = #tpu.pipeline_mode<synchronous>, transform_indices = @transform_5, window_bounds = array<i64: 128, 256>}, {pipeline_mode = #tpu.pipeline_mode<synchronous>, transform_indices = @transform_6, window_bounds = array<i64: 1, 256>}, {transform_indices = @transform_7, window_bounds = array<i64: 8, 256>}]} {
    %c0 = arith.constant 0 : index
    %c0_0 = arith.constant 0 : index
    %0 = vector.load %arg1[%c0, %c0_0] : memref<8x32xf32, #tpu.memory_space<vmem>>, vector<8x32xf32>
    %c0_1 = arith.constant 0 : index
    %c0_2 = arith.constant 0 : index
    %1 = vector.load %arg2[%c0_1, %c0_2] : memref<32x128xf32, #tpu.memory_space<vmem>>, vector<32x128xf32>
    %cst = arith.constant dense<0.000000e+00> : vector<8x128xf32>
    %2 = tpu.matmul %0, %1, %cst {dimension_numbers = #tpu.dot_dimension_numbers<[1], [0], [0], [1], [0, 0, 1, 1], [], []>} : vector<8x32xf32>, vector<32x128xf32>, vector<8x128xf32> -> vector<8x128xf32>
    %c0_3 = arith.constant 0 : index
    %c0_4 = arith.constant 0 : index
    %3 = vector.load %arg3[%c0_3, %c0_4] : memref<1x128xf32, #tpu.memory_space<vmem>>, vector<1x128xf32>
    %4 = vector.broadcast %3 : vector<1x128xf32> to vector<8x128xf32>
    %5 = arith.addf %2, %4 : vector<8x128xf32>
    %cst_5 = arith.constant 0.000000e+00 : f32
    %6 = vector.broadcast %cst_5 : f32 to vector<8x128xf32>
    %7 = arith.maximumf %5, %6 : vector<8x128xf32>
    %c0_6 = arith.constant 0 : index
    %c0_7 = arith.constant 0 : index
    %8 = vector.load %arg4[%c0_6, %c0_7] : memref<128x128xf32, #tpu.memory_space<vmem>>, vector<128x128xf32>
    %cst_8 = arith.constant dense<0.000000e+00> : vector<8x128xf32>
    %9 = tpu.matmul %7, %8, %cst_8 {dimension_numbers = #tpu.dot_dimension_numbers<[1], [0], [0], [1], [0, 0, 1, 1], [], []>} : vector<8x128xf32>, vector<128x128xf32>, vector<8x128xf32> -> vector<8x128xf32>
    %c0_9 = arith.constant 0 : index
    %c0_10 = arith.constant 0 : index
    %10 = vector.load %arg5[%c0_9, %c0_10] : memref<1x128xf32, #tpu.memory_space<vmem>>, vector<1x128xf32>
    %11 = vector.broadcast %10 : vector<1x128xf32> to vector<8x128xf32>
    %12 = arith.addf %9, %11 : vector<8x128xf32>
    %cst_11 = arith.constant 0.000000e+00 : f32
    %13 = vector.broadcast %cst_11 : f32 to vector<8x128xf32>
    %14 = arith.maximumf %12, %13 : vector<8x128xf32>
    %c0_12 = arith.constant 0 : index
    %c0_13 = arith.constant 0 : index
    %15 = vector.load %arg6[%c0_12, %c0_13] : memref<128x256xf32, #tpu.memory_space<vmem>>, vector<128x256xf32>
    %cst_14 = arith.constant dense<0.000000e+00> : vector<8x256xf32>
    %16 = tpu.matmul %14, %15, %cst_14 {dimension_numbers = #tpu.dot_dimension_numbers<[1], [0], [0], [1], [0, 0, 1, 1], [], []>} : vector<8x128xf32>, vector<128x256xf32>, vector<8x256xf32> -> vector<8x256xf32>
    %c0_15 = arith.constant 0 : index
    %c0_16 = arith.constant 0 : index
    %17 = vector.load %arg7[%c0_15, %c0_16] : memref<1x256xf32, #tpu.memory_space<vmem>>, vector<1x256xf32>
    %18 = vector.broadcast %17 : vector<1x256xf32> to vector<8x256xf32>
    %19 = arith.addf %16, %18 : vector<8x256xf32>
    %c0_17 = arith.constant 0 : index
    %c0_18 = arith.constant 0 : index
    %20 = vector.load %arg8[%c0_17, %c0_18] : memref<8x256xf32, #tpu.memory_space<vmem>>, vector<8x256xf32>
    tpu.vector_store %arg8[%c0_17, %c0_18], %19 {strides = array<i32>} : memref<8x256xf32, #tpu.memory_space<vmem>>, vector<8x256xf32>,
    return
  }
  func.func @transform_0(%arg0: i32) -> (i32, i32) {
    %c0_i32 = arith.constant 0 : i32
    %c0_i32_0 = arith.constant 0 : i32
    return %arg0, %c0_i32 : i32, i32
  }
  func.func @transform_1(%arg0: i32) -> (i32, i32) {
    %c0_i32 = arith.constant 0 : i32
    %c0_i32_0 = arith.constant 0 : i32
    %c0_i32_1 = arith.constant 0 : i32
    return %c0_i32, %c0_i32_0 : i32, i32
  }
  func.func @transform_2(%arg0: i32) -> (i32, i32) {
    %c0_i32 = arith.constant 0 : i32
    %c0_i32_0 = arith.constant 0 : i32
    %c0_i32_1 = arith.constant 0 : i32
    return %c0_i32, %c0_i32_0 : i32, i32
  }
  func.func @transform_3(%arg0: i32) -> (i32, i32) {
    %c0_i32 = arith.constant 0 : i32
    %c0_i32_0 = arith.constant 0 : i32
    %c0_i32_1 = arith.constant 0 : i32
    return %c0_i32, %c0_i32_0 : i32, i32
  }
  func.func @transform_4(%arg0: i32) -> (i32, i32) {
    %c0_i32 = arith.constant 0 : i32
    %c0_i32_0 = arith.constant 0 : i32
    %c0_i32_1 = arith.constant 0 : i32
    return %c0_i32, %c0_i32_0 : i32, i32
  }
  func.func @transform_5(%arg0: i32) -> (i32, i32) {
    %c0_i32 = arith.constant 0 : i32
    %c0_i32_0 = arith.constant 0 : i32
    %c0_i32_1 = arith.constant 0 : i32
    return %c0_i32, %c0_i32_0 : i32, i32
  }
  func.func @transform_6(%arg0: i32) -> (i32, i32) {
    %c0_i32 = arith.constant 0 : i32
    %c0_i32_0 = arith.constant 0 : i32
    %c0_i32_1 = arith.constant 0 : i32
    return %c0_i32, %c0_i32_0 : i32, i32
  }
  func.func @transform_7(%arg0: i32) -> (i32, i32) {
    %c0_i32 = arith.constant 0 : i32
    %c0_i32_0 = arith.constant 0 : i32
    return %arg0, %c0_i32 : i32, i32
  }
}

</mosaic_0001>

<llo_original>
// kernel: encoder_forward.1
$region0: #{encoder_forward.1}
  #allocation0 [shape = 'u32[]', space=smem, size = 0x4, offset = 0x4, fixed_abs, tag = 'smem constant byte address 0x4 - core index']
  #allocation1 [shape = 'u32[144,128]{1,0:T(1,128)}', space=vmem, size = 0x12000, scoped, tag = 'internal scratch']
  %s0 = inlined_call_operand.hbm [shape: f32[8,32], index: 0, kind: input, shape index: {}]
  %s1 = inlined_call_operand.hbm [shape: f32[32,128], index: 1, kind: input, shape index: {}]
  %s2 = inlined_call_operand.vmem [shape: f32[1,128], index: 2, kind: input, shape index: {}]
  %s3 = inlined_call_operand.hbm [shape: f32[128,128], index: 3, kind: input, shape index: {}]
  %s4 = inlined_call_operand.vmem [shape: f32[1,128], index: 4, kind: input, shape index: {}]
  %s5 = inlined_call_operand.hbm [shape: f32[128,256], index: 5, kind: input, shape index: {}]
  %s6 = inlined_call_operand.vmem [shape: f32[1,256], index: 6, kind: input, shape index: {}]
  %s7 = inlined_call_operand.vmem [shape: f32[8,256], index: 7, kind: output, shape index: {}]
  %s8 = sld [smem:[#allocation0]]
  $region54: #{encoder_forward.1} parent=0
    _
  %s10 = ssub.s32 1, %s8
  %s11 = scalar_select 0, %s10, %s8
  $region1: #{encoder_forward.1} parent=0
    #allocation2 [shape = 'u8[4096]{0}', space=vmem, size = 0x1000, scoped, tag = 'input window, operand 0, single buffered']
    #allocation3 [shape = 's32[1]{0}', space=sflag, size = 0x4, scoped, tag = 'scoped memory for encoder_forward.1']
    #allocation4 [shape = 'u8[16384]{0}', space=vmem, size = 0x4000, scoped, tag = 'input window, operand 1, single buffered']
    #allocation5 [shape = 's32[1]{0}', space=sflag, size = 0x4, scoped, tag = 'scoped memory for encoder_forward.1']
    #allocation6 [shape = 'u8[65536]{0}', space=vmem, size = 0x10000, scoped, tag = 'input window, operand 3, single buffered']
    #allocation7 [shape = 'u8[131072]{0}', space=vmem, size = 0x20000, scoped, tag = 'input window, operand 5, single buffered']
    #allocation8 [shape = 's32[1]{0}', space=sflag, size = 0x4, scoped, tag = 'scoped memory for encoder_forward.1']
    %12 = vsyncpa [#allocation3], 0
    %13 = vsyncpa [#allocation5], 0
    %14 = vsyncpa [#allocation8], 0
    // Predicated region
    $region2: #{encoder_forward.1} parent=1 // pred_check
      _
    $region3: #{encoder_forward.1} parent=1 // pred_check_branch
      %16 = sbr.rel (0) target = $region5
    $region4: #{encoder_forward.1} parent=1 // pred_region
      %s18 = ssub.s32 128, 128
      %19 = vsyncadd [#allocation3], %s18
      %s21 = sshll.u32 [#allocation2], 4
      %s22 = int_to_ptr.vmem [resolvable:$true] %s21
      %24 = dma.hbm_to_vmem [thread:$0]  %s0, 128, %s22, [#allocation3]
    $region5: #{encoder_forward.1} parent=1 // pred_fallthru
      _
    // Predicated region
    $region6: #{encoder_forward.1} parent=1 // pred_check
      _
    $region7: #{encoder_forward.1} parent=1 // pred_check_branch
      %26 = sbr.rel (0) target = $region9
    $region8: #{encoder_forward.1} parent=1 // pred_region
      %s28 = ssub.s32 512, 512
      %29 = vsyncadd [#allocation5], %s28
      %s30 = sshll.u32 [#allocation4], 4
      %s31 = int_to_ptr.vmem [resolvable:$true] %s30
      %36 = dma.hbm_to_vmem [thread:$0]  %s1, 512, %s31, [#allocation5], 128, 128, 8
    $region9: #{encoder_forward.1} parent=1 // pred_fallthru
      _
    // Predicated region
    $region10: #{encoder_forward.1} parent=1 // pred_check
      _
    $region11: #{encoder_forward.1} parent=1 // pred_check_branch
      %38 = sbr.rel (0) target = $region13
    $region12: #{encoder_forward.1} parent=1 // pred_region
      _
    $region13: #{encoder_forward.1} parent=1 // pred_fallthru
      _
    // Predicated region
    $region14: #{encoder_forward.1} parent=1 // pred_check
      _
    $region15: #{encoder_forward.1} parent=1 // pred_check_branch
      %40 = sbr.rel (0) target = $region17
    $region16: #{encoder_forward.1} parent=1 // pred_region
      %s42 = ssub.s32 2048, 2048
      %43 = vsyncadd [#allocation5], %s42
      %s44 = sshll.u32 [#allocation6], 4
      %s45 = int_to_ptr.vmem [resolvable:$true] %s44
      %50 = dma.hbm_to_vmem [thread:$0]  %s3, 2048, %s45, [#allocation5], 128, 128, 8
    $region17: #{encoder_forward.1} parent=1 // pred_fallthru
      _
    // Predicated region
    $region18: #{encoder_forward.1} parent=1 // pred_check
      _
    $region19: #{encoder_forward.1} parent=1 // pred_check_branch
      %52 = sbr.rel (0) target = $region21
    $region20: #{encoder_forward.1} parent=1 // pred_region
      _
    $region21: #{encoder_forward.1} parent=1 // pred_fallthru
      _
    // Predicated region
    $region22: #{encoder_forward.1} parent=1 // pred_check
      _
    $region23: #{encoder_forward.1} parent=1 // pred_check_branch
      %54 = sbr.rel (0) target = $region25
    $region24: #{encoder_forward.1} parent=1 // pred_region
      %s56 = ssub.s32 4096, 4096
      %57 = vsyncadd [#allocation8], %s56
      %s58 = sshll.u32 [#allocation7], 4
      %s59 = int_to_ptr.vmem [resolvable:$true] %s58
      %64 = dma.hbm_to_vmem [thread:$0]  %s5, 4096, %s59, [#allocation8], 256, 256, 16
    $region25: #{encoder_forward.1} parent=1 // pred_fallthru
      _
    // Predicated region
    $region26: #{encoder_forward.1} parent=1 // pred_check
      _
    $region27: #{encoder_forward.1} parent=1 // pred_check_branch
      %66 = sbr.rel (0) target = $region29
    $region28: #{encoder_forward.1} parent=1 // pred_region
      _
    $region29: #{encoder_forward.1} parent=1 // pred_fallthru
      _
    // Predicated region
    $region30: #{encoder_forward.1} parent=1 // pred_check
      _
    $region31: #{encoder_forward.1} parent=1 // pred_check_branch
      %68 = sbr.rel (0) target = $region33
    $region32: #{encoder_forward.1} parent=1 // pred_region
      %69 = dma.done [#allocation3], 128
    $region33: #{encoder_forward.1} parent=1 // pred_fallthru
      _
    // Predicated region
    $region34: #{encoder_forward.1} parent=1 // pred_check
      _
    $region35: #{encoder_forward.1} parent=1 // pred_check_branch
      %71 = sbr.rel (0) target = $region37
    $region36: #{encoder_forward.1} parent=1 // pred_region
      %72 = dma.done [#allocation5], 512
    $region37: #{encoder_forward.1} parent=1 // pred_fallthru
      _
    // Predicated region
    $region38: #{encoder_forward.1} parent=1 // pred_check
      _
    $region39: #{encoder_forward.1} parent=1 // pred_check_branch
      %74 = sbr.rel (0) target = $region41
    $region40: #{encoder_forward.1} parent=1 // pred_region
      %75 = dma.done [#allocation5], 2048
    $region41: #{encoder_forward.1} parent=1 // pred_fallthru
      _
    // Predicated region
    $region42: #{encoder_forward.1} parent=1 // pred_check
      _
    $region43: #{encoder_forward.1} parent=1 // pred_check_branch
      %77 = sbr.rel (0) target = $region45
    $region44: #{encoder_forward.1} parent=1 // pred_region
      %78 = dma.done [#allocation8], 4096
    $region45: #{encoder_forward.1} parent=1 // pred_fallthru
      _
    %v79 = vld [vmem:[#allocation2] sm:$0xff]
    %v80 = vld [vmem:[#allocation4] sm:$0xff]
    %v81 = vld [vmem:[#allocation4 + $0x8] sm:$0xff]
    %v82 = vld [vmem:[#allocation4 + $0x10] sm:$0xff]
    %v83 = vld [vmem:[#allocation4 + $0x18] sm:$0xff]
    %v84 = vld [vmem:[%s2] sm:$0x1]
    %v86 = vlaneseq
    %v87 = vshrl.u32 %v86, 7
    %v88 = vsub.s32 0, %v87
    %v89 = vrot.slane %v84, %v88
    %vm91 = vcmask 261120
    %v93 = vsel %vm91, %v79, 0
    %95 = vmatprep.subr.mxu0 0.0
    %96 = vmatpush1.msra.mxu0 %v80
    %97 = vmatprep.subr.mxu0 0.0
    %98 = vmatpush1.msra.mxu0 %v81
    %99 = vmatprep.subr.mxu0 0.0
    %100 = vmatpush1.msra.mxu0 %v82
    %101 = vmatprep.subr.mxu0 0.0
    %102 = vmatpush1.msra.mxu0 %v83
    %103 = vmatprep.subr.mxu0 0.0
    %104 = vmatpush1.msra.mxu0 0.0
    %105 = vmatprep.subr.mxu0 0.0
    %106 = vmatpush1.msra.mxu0 0.0
    %107 = vmatprep.subr.mxu0 0.0
    %108 = vmatpush1.msra.mxu0 0.0
    %109 = vmatprep.subr.mxu0 0.0
    %110 = vmatpush1.msra.mxu0 0.0
    %111 = vmatprep.subr.mxu0 0.0
    %112 = vmatpush1.msra.mxu0 0.0
    %113 = vmatprep.subr.mxu0 0.0
    %114 = vmatpush1.msra.mxu0 0.0
    %115 = vmatprep.subr.mxu0 0.0
    %116 = vmatpush1.msra.mxu0 0.0
    %117 = vmatprep.subr.mxu0 0.0
    %118 = vmatpush1.msra.mxu0 0.0
    %119 = vmatprep.subr.mxu0 0.0
    %120 = vmatpush1.msra.mxu0 0.0
    %121 = vmatprep.subr.mxu0 0.0
    %122 = vmatpush1.msra.mxu0 0.0
    %123 = vmatprep.subr.mxu0 0.0
    %124 = vmatpush1.msra.mxu0 0.0
    %125 = vmatprep.subr.mxu0 0.0
    %126 = vmatpush1.msra.mxu0 0.0
    %127 = vmatprep.subr.mxu0 0.0
    %128 = vmatpush1.msra.mxu0 0.0
    %129 = vmatprep.subr.mxu0 0.0
    %130 = vmatpush1.msra.mxu0 0.0
    %131 = vmatprep.subr.mxu0 0.0
    %132 = vmatpush1.msra.mxu0 0.0
    %133 = vmatprep.subr.mxu0 0.0
    %134 = vmatpush1.msra.mxu0 0.0
    %135 = vmatprep.subr.mxu0 0.0
    %136 = vmatpush1.msra.mxu0 0.0
    %137 = vmatprep.subr.mxu0 0.0
    %138 = vmatpush1.msra.mxu0 0.0
    %139 = vmatprep.subr.mxu0 0.0
    %140 = vmatpush1.msra.mxu0 0.0
    %141 = vmatprep.subr.mxu0 0.0
    %142 = vmatpush1.msra.mxu0 0.0
    %143 = vmatprep.subr.mxu0 0.0
    %144 = vmatpush1.msra.mxu0 0.0
    %145 = vmatprep.subr.mxu0 0.0
    %146 = vmatpush1.msra.mxu0 0.0
    %147 = vmatprep.subr.mxu0 0.0
    %148 = vmatpush1.msra.mxu0 0.0
    %149 = vmatprep.subr.mxu0 0.0
    %150 = vmatpush1.msra.mxu0 0.0
    %151 = vmatprep.subr.mxu0 0.0
    %152 = vmatpush1.msra.mxu0 0.0
    %153 = vmatprep.subr.mxu0 0.0
    %154 = vmatpush1.msra.mxu0 0.0
    %155 = vmatprep.subr.mxu0 0.0
    %156 = vmatpush1.msra.mxu0 0.0
    %157 = vmatprep.subr.mxu0 0.0
    %158 = vmatpush1.msra.mxu0 0.0
    %159 = vmatprep.mubr.f32.mxu0 0.0
    %160 = vmatmul.mubr.f32.gmra.mrb[0].mxu0 %v93
    %v161 = vpop.f32.mrb[0].mxu0
    %v162 = vadd.f32 %v89, %v161
    %v163 = vpop.f32.mrb[0].mxu0
    %164 = vdwg.mxu0
    %v165 = vmax.f32 %v162, 0.0
    %v166 = vld [vmem:[#allocation6] sm:$0xff]
    %v167 = vld [vmem:[#allocation6 + $0x8] sm:$0xff]
    %v168 = vld [vmem:[#allocation6 + $0x10] sm:$0xff]
    %v169 = vld [vmem:[#allocation6 + $0x18] sm:$0xff]
    %v170 = vld [vmem:[#allocation6 + $0x20] sm:$0xff]
    %v171 = vld [vmem:[#allocation6 + $0x28] sm:$0xff]
    %v172 = vld [vmem:[#allocation6 + $0x30] sm:$0xff]
    %v173 = vld [vmem:[#allocation6 + $0x38] sm:$0xff]
    %v174 = vld [vmem:[#allocation6 + $0x40] sm:$0xff]
    %v175 = vld [vmem:[#allocation6 + $0x48] sm:$0xff]
    %v176 = vld [vmem:[#allocation6 + $0x50] sm:$0xff]
    %v177 = vld [vmem:[#allocation6 + $0x58] sm:$0xff]
    %v178 = vld [vmem:[#allocation6 + $0x60] sm:$0xff]
    %v179 = vld [vmem:[#allocation6 + $0x68] sm:$0xff]
    %v180 = vld [vmem:[#allocation6 + $0x70] sm:$0xff]
    %v181 = vld [vmem:[#allocation6 + $0x78] sm:$0xff]
    %v182 = vld [vmem:[%s4] sm:$0x1]
    %v184 = vlaneseq
    %v185 = vshrl.u32 %v184, 7
    %v186 = vsub.s32 0, %v185
    %v187 = vrot.slane %v182, %v186
    %189 = vmatprep.subr.mxu0 0.0
    %190 = vmatpush1.msra.mxu0 %v166
    %191 = vmatprep.subr.mxu0 0.0
    %192 = vmatpush1.msra.mxu0 %v167
    %193 = vmatprep.subr.mxu0 0.0
    %194 = vmatpush1.msra.mxu0 %v168
    %195 = vmatprep.subr.mxu0 0.0
    %196 = vmatpush1.msra.mxu0 %v169
    %197 = vmatprep.subr.mxu0 0.0
    %198 = vmatpush1.msra.mxu0 %v170
    %199 = vmatprep.subr.mxu0 0.0
    %200 = vmatpush1.msra.mxu0 %v171
    %201 = vmatprep.subr.mxu0 0.0
    %202 = vmatpush1.msra.mxu0 %v172
    %203 = vmatprep.subr.mxu0 0.0
    %204 = vmatpush1.msra.mxu0 %v173
    %205 = vmatprep.subr.mxu0 0.0
    %206 = vmatpush1.msra.mxu0 %v174
    %207 = vmatprep.subr.mxu0 0.0
    %208 = vmatpush1.msra.mxu0 %v175
    %209 = vmatprep.subr.mxu0 0.0
    %210 = vmatpush1.msra.mxu0 %v176
    %211 = vmatprep.subr.mxu0 0.0
    %212 = vmatpush1.msra.mxu0 %v177
    %213 = vmatprep.subr.mxu0 0.0
    %214 = vmatpush1.msra.mxu0 %v178
    %215 = vmatprep.subr.mxu0 0.0
    %216 = vmatpush1.msra.mxu0 %v179
    %217 = vmatprep.subr.mxu0 0.0
    %218 = vmatpush1.msra.mxu0 %v180
    %219 = vmatprep.subr.mxu0 0.0
    %220 = vmatpush1.msra.mxu0 %v181
    %221 = vmatprep.subr.mxu0 0.0
    %222 = vmatpush1.msra.mxu0 0.0
    %223 = vmatprep.subr.mxu0 0.0
    %224 = vmatpush1.msra.mxu0 0.0
    %225 = vmatprep.subr.mxu0 0.0
    %226 = vmatpush1.msra.mxu0 0.0
    %227 = vmatprep.subr.mxu0 0.0
    %228 = vmatpush1.msra.mxu0 0.0
    %229 = vmatprep.subr.mxu0 0.0
    %230 = vmatpush1.msra.mxu0 0.0
    %231 = vmatprep.subr.mxu0 0.0
    %232 = vmatpush1.msra.mxu0 0.0
    %233 = vmatprep.subr.mxu0 0.0
    %234 = vmatpush1.msra.mxu0 0.0
    %235 = vmatprep.subr.mxu0 0.0
    %236 = vmatpush1.msra.mxu0 0.0
    %237 = vmatprep.subr.mxu0 0.0
    %238 = vmatpush1.msra.mxu0 0.0
    %239 = vmatprep.subr.mxu0 0.0
    %240 = vmatpush1.msra.mxu0 0.0
    %241 = vmatprep.subr.mxu0 0.0
    %242 = vmatpush1.msra.mxu0 0.0
    %243 = vmatprep.subr.mxu0 0.0
    %244 = vmatpush1.msra.mxu0 0.0
    %245 = vmatprep.subr.mxu0 0.0
    %246 = vmatpush1.msra.mxu0 0.0
    %247 = vmatprep.subr.mxu0 0.0
    %248 = vmatpush1.msra.mxu0 0.0
    %249 = vmatprep.subr.mxu0 0.0
    %250 = vmatpush1.msra.mxu0 0.0
    %251 = vmatprep.subr.mxu0 0.0
    %252 = vmatpush1.msra.mxu0 0.0
    %253 = vmatprep.mubr.f32.mxu0 0.0
    %254 = vmatmul.mubr.f32.gmra.mrb[0].mxu0 %v165
    %v255 = vpop.f32.mrb[0].mxu0
    %v256 = vadd.f32 %v187, %v255
    %v257 = vpop.f32.mrb[0].mxu0
    %258 = vdwg.mxu0
    %v259 = vmax.f32 %v256, 0.0
    %v260 = vld [vmem:[#allocation7] sm:$0xff]
    %v261 = vld [vmem:[#allocation7 + $0x8] sm:$0xff]
    %v262 = vld [vmem:[#allocation7 + $0x10] sm:$0xff]
    %v263 = vld [vmem:[#allocation7 + $0x18] sm:$0xff]
    %v264 = vld [vmem:[#allocation7 + $0x20] sm:$0xff]
    %v265 = vld [vmem:[#allocation7 + $0x28] sm:$0xff]
    %v266 = vld [vmem:[#allocation7 + $0x30] sm:$0xff]
    %v267 = vld [vmem:[#allocation7 + $0x38] sm:$0xff]
    %v268 = vld [vmem:[#allocation7 + $0x40] sm:$0xff]
    %v269 = vld [vmem:[#allocation7 + $0x48] sm:$0xff]
    %v270 = vld [vmem:[#allocation7 + $0x50] sm:$0xff]
    %v271 = vld [vmem:[#allocation7 + $0x58] sm:$0xff]
    %v272 = vld [vmem:[#allocation7 + $0x60] sm:$0xff]
    %v273 = vld [vmem:[#allocation7 + $0x68] sm:$0xff]
    %v274 = vld [vmem:[#allocation7 + $0x70] sm:$0xff]
    %v275 = vld [vmem:[#allocation7 + $0x78] sm:$0xff]
    %v276 = vld [vmem:[#allocation7 + $0x80] sm:$0xff]
    %v277 = vld [vmem:[#allocation7 + $0x88] sm:$0xff]
    %v278 = vld [vmem:[#allocation7 + $0x90] sm:$0xff]
    %v279 = vld [vmem:[#allocation7 + $0x98] sm:$0xff]
    %v280 = vld [vmem:[#allocation7 + $0xa0] sm:$0xff]
    %v281 = vld [vmem:[#allocation7 + $0xa8] sm:$0xff]
    %v282 = vld [vmem:[#allocation7 + $0xb0] sm:$0xff]
    %v283 = vld [vmem:[#allocation7 + $0xb8] sm:$0xff]
    %v284 = vld [vmem:[#allocation7 + $0xc0] sm:$0xff]
    %v285 = vld [vmem:[#allocation7 + $0xc8] sm:$0xff]
    %v286 = vld [vmem:[#allocation7 + $0xd0] sm:$0xff]
    %v287 = vld [vmem:[#allocation7 + $0xd8] sm:$0xff]
    %v288 = vld [vmem:[#allocation7 + $0xe0] sm:$0xff]
    %v289 = vld [vmem:[#allocation7 + $0xe8] sm:$0xff]
    %v290 = vld [vmem:[#allocation7 + $0xf0] sm:$0xff]
    %v291 = vld [vmem:[#allocation7 + $0xf8] sm:$0xff]
    %v292 = vld [vmem:[%s6] sm:$0x3]
    %v294 = vlaneseq
    %v295 = vshrl.u32 %v294, 7
    %v296 = vsub.s32 0, %v295
    %v297 = vrot.slane %v292, %v296
    %v298 = vlaneseq
    %v299 = vshrl.u32 %v298, 7
    %v300 = vsub.s32 1, %v299
    %v301 = vrot.slane %v292, %v300
    %304 = vmatprep.subr.mxu0 %v261
    %305 = vmatpush1.msra.mxu0 %v260
    %306 = vmatprep.subr.mxu0 %v263
    %307 = vmatpush1.msra.mxu0 %v262
    %308 = vmatprep.subr.mxu0 %v265
    %309 = vmatpush1.msra.mxu0 %v264
    %310 = vmatprep.subr.mxu0 %v267
    %311 = vmatpush1.msra.mxu0 %v266
    %312 = vmatprep.subr.mxu0 %v269
    %313 = vmatpush1.msra.mxu0 %v268
    %314 = vmatprep.subr.mxu0 %v271
    %315 = vmatpush1.msra.mxu0 %v270
    %316 = vmatprep.subr.mxu0 %v273
    %317 = vmatpush1.msra.mxu0 %v272
    %318 = vmatprep.subr.mxu0 %v275
    %319 = vmatpush1.msra.mxu0 %v274
    %320 = vmatprep.subr.mxu0 %v277
    %321 = vmatpush1.msra.mxu0 %v276
    %322 = vmatprep.subr.mxu0 %v279
    %323 = vmatpush1.msra.mxu0 %v278
    %324 = vmatprep.subr.mxu0 %v281
    %325 = vmatpush1.msra.mxu0 %v280
    %326 = vmatprep.subr.mxu0 %v283
    %327 = vmatpush1.msra.mxu0 %v282
    %328 = vmatprep.subr.mxu0 %v285
    %329 = vmatpush1.msra.mxu0 %v284
    %330 = vmatprep.subr.mxu0 %v287
    %331 = vmatpush1.msra.mxu0 %v286
    %332 = vmatprep.subr.mxu0 %v289
    %333 = vmatpush1.msra.mxu0 %v288
    %334 = vmatprep.subr.mxu0 %v291
    %335 = vmatpush1.msra.mxu0 %v290
    %336 = vmatprep.subr.mxu0 0.0
    %337 = vmatpush1.msra.mxu0 0.0
    %338 = vmatprep.subr.mxu0 0.0
    %339 = vmatpush1.msra.mxu0 0.0
    %340 = vmatprep.subr.mxu0 0.0
    %341 = vmatpush1.msra.mxu0 0.0
    %342 = vmatprep.subr.mxu0 0.0
    %343 = vmatpush1.msra.mxu0 0.0
    %344 = vmatprep.subr.mxu0 0.0
    %345 = vmatpush1.msra.mxu0 0.0
    %346 = vmatprep.subr.mxu0 0.0
    %347 = vmatpush1.msra.mxu0 0.0
    %348 = vmatprep.subr.mxu0 0.0
    %349 = vmatpush1.msra.mxu0 0.0
    %350 = vmatprep.subr.mxu0 0.0
    %351 = vmatpush1.msra.mxu0 0.0
    %352 = vmatprep.subr.mxu0 0.0
    %353 = vmatpush1.msra.mxu0 0.0
    %354 = vmatprep.subr.mxu0 0.0
    %355 = vmatpush1.msra.mxu0 0.0
    %356 = vmatprep.subr.mxu0 0.0
    %357 = vmatpush1.msra.mxu0 0.0
    %358 = vmatprep.subr.mxu0 0.0
    %359 = vmatpush1.msra.mxu0 0.0
    %360 = vmatprep.subr.mxu0 0.0
    %361 = vmatpush1.msra.mxu0 0.0
    %362 = vmatprep.subr.mxu0 0.0
    %363 = vmatpush1.msra.mxu0 0.0
    %364 = vmatprep.subr.mxu0 0.0
    %365 = vmatpush1.msra.mxu0 0.0
    %366 = vmatprep.subr.mxu0 0.0
    %367 = vmatpush1.msra.mxu0 0.0
    %368 = vmatprep.mubr.f32.mxu0 0.0
    %369 = vmatmul.mubr.f32.gmra.mrb[0].mxu0 %v259
    %v370 = vpop.f32.mrb[0].mxu0
    %v371 = vadd.f32 %v297, %v370
    %v372 = vpop.f32.mrb[0].mxu0
    %v373 = vadd.f32 %v301, %v372
    %374 = vdwg.mxu0
    %375 = vst [vmem:[%s7] sm:$0xff] %v371
    %376 = vst [vmem:[%s7 + $0x8] sm:$0xff] %v373
    // Predicated region
    $region46: #{encoder_forward.1} parent=1 // pred_check
      _
    $region47: #{encoder_forward.1} parent=1 // pred_check_branch
      %378 = sbr.rel (0) target = $region49
    $region48: #{encoder_forward.1} parent=1 // pred_region
      _
    $region49: #{encoder_forward.1} parent=1 // pred_fallthru
      _
    // Predicated region
    $region50: #{encoder_forward.1} parent=1 // pred_check
      _
    $region51: #{encoder_forward.1} parent=1 // pred_check_branch
      %380 = sbr.rel (0) target = $region53
    $region52: #{encoder_forward.1} parent=1 // pred_region
      _
    $region53: #{encoder_forward.1} parent=1 // pred_fallthru
      _
    %381 = vsyncpa [#allocation3], 1
    %382 = vsyncpa [#allocation5], 1
    %383 = vsyncpa [#allocation8], 1

</llo_original>
